<compile_context>
chip_gen: v5e
topology: v5e:2x2
jax: 0.10.0
libtpu: 0.0.40
codegen_flags: <defaults>
</compile_context>

<pallas_src>
import functools
import math

import jax
import jax.numpy as jnp
from jax.experimental import pallas as pl
from jax.experimental.pallas import tpu as pltpu


def _option_a_shortcut_kernel(x_ref, s_ref, o_ref, *, pad, nb, c_in):
    # x_ref: (NB*C, Ho*W)   even-h rows only, lane-dense
    # s_ref: (Ho*W, Ho*Wo)  0/1 W-subsample selector (grid-invariant)
    # o_ref: (NB, C + 2*pad, Ho*Wo)
    howo = o_ref.shape[-1]

    # Fused ::2-on-W subsample as a single 2-D selection matmul on the MXU.
    sub = jnp.dot(x_ref[...], s_ref[...], preferred_element_type=jnp.float32)
    sub = sub.reshape(nb, c_in, howo).astype(o_ref.dtype)

    if pad == 0:
        o_ref[...] = sub
    elif pad % 8 == 0 and c_in % 8 == 0:
        # Sublane-aligned slabs: zero only the padded channels, write the data
        # channels exactly once (no full-output zero + overwrite).
        zpad = jnp.zeros((nb, pad, howo), o_ref.dtype)
        o_ref[:, :pad, :] = zpad
        o_ref[:, pad + c_in:, :] = zpad
        o_ref[:, pad:pad + c_in, :] = sub
    else:
        # Misaligned pad/C: build the full tile and issue one aligned store
        # instead of three masked partial stores.
        zpad = jnp.zeros((nb, pad, howo), o_ref.dtype)
        o_ref[...] = jnp.concatenate([zpad, sub, zpad], axis=1)


def _num_tensorcores():
    """Best-effort TensorCore count (v7x / megacore parts have 2, v5e/v6e 1)."""
    try:
        kind = jax.devices()[0].device_kind.lower()
    except Exception:
        return 1
    if any(tag in kind for tag in ("v7", "7x", "v4", "v5p", "v5 p")):
        return 2
    return 1


def lambda_layer_option_a(x, planes, *, block_n=None):
    """Pallas equivalent of LambdaLayer(lambda x: F.pad(x[:,:,::2,::2], ...))."""
    N, C, H, W = x.shape
    pad = planes // 4
    C_out = C + 2 * pad
    Ho, Wo = (H + 1) // 2, (W + 1) // 2     # matches PyTorch ::2 for odd sizes
    K, HoWo = Ho * W, Ho * Wo

    # H-subsample in the wrapper (strided slice of half the rows), then a free
    # metadata reshape to a 2-D lane-dense matmul operand: halves the MXU K
    # and removes any in-kernel lhs reshape / C%8 layout dependence.
    x_even = x[:, :, ::2, :].reshape(N * C, K)

    # 0/1 selection matrix for the W-subsample:
    #   sel[i*W + w, i2*Wo + j] = (i == i2) & (w == 2*j)
    # TODO(synk): sel is O((Ho*W) * (Ho*Wo)); for feature maps much larger than
    # CIFAR's 32x32 it should be factored (Kronecker sel_H x sel_W) or replaced
    # by a strided load to avoid blowing past v7x's 64 MiB VMEM.
    r = jnp.arange(K)
    ri, rw = r // W, r % W
    c = jnp.arange(HoWo)
    ci, cj = c // Wo, c % Wo
    sel = ((ri[:, None] == ci[None, :]) &
           (rw[:, None] == 2 * cj[None, :])).astype(x.dtype)

    # --- block sizing -------------------------------------------------------
    itemsize = jnp.dtype(x.dtype).itemsize
    bytes_per_img = C * K * itemsize
    if block_n is None:
        # ~2 MiB input blocks: amortizes the ~0.35us/step grid overhead and
        # gives the MXU a large M (= NB*C), while keeping total VMEM
        # (2x in + 2x out + 1x sel) well under the scoped limit on all gens.
        NB = max(1, min(N, (2 * 1024 * 1024) // max(1, bytes_per_img)))
        # Only split the batch when there are >=2 TensorCores to feed (v7x /
        # megacore); on single-core v5e/v6e fewer, larger blocks are better.
        n_tc = _num_tensorcores()
        if n_tc > 1 and N >= n_tc:
            NB = min(NB, pl.cdiv(N, n_tc))
    else:
        NB = max(1, min(block_n, N))

    # Keep the (NB*C, K) input block sublane-aligned (NB*C % 8 == 0) unless the
    # block already covers the whole batch.
    if NB != N and (NB * C) % 8 != 0:
        m = 8 // math.gcd(C, 8)
        NB = min(N, max(m, (NB // m) * m))

    grid = (pl.cdiv(N, NB),)
    kernel = functools.partial(_option_a_shortcut_kernel,
                               pad=pad, nb=NB, c_in=C)

    def call(sel_spec):
        return pl.pallas_call(
            kernel,
            out_shape=jax.ShapeDtypeStruct((N, C_out, HoWo), x.dtype),
            grid=grid,
            in_specs=[
                pl.BlockSpec((NB * C, K), lambda n: (n, 0)),
                sel_spec,
            ],
            out_specs=pl.BlockSpec((NB, C_out, HoWo), lambda n: (n, 0, 0)),
            compiler_params=pltpu.CompilerParams(
                dimension_semantics=("parallel",),
                vmem_limit_bytes=32 * 1024 * 1024),
        )(x_even, sel)

    try:
        # Grid-invariant selector: constant index_map + single VMEM buffer
        # (no pointless double-buffering of a block that never changes).
        out = call(pl.BlockSpec((K, HoWo), lambda n: (0, 0),
                                pipeline_mode=pl.Buffered(1)))
    except Exception:
        # Fallback for JAX builds without single-buffer pipeline_mode support.
        out = call(pl.BlockSpec((K, HoWo), lambda n: (0, 0)))

    return out.reshape(N, C_out, Ho, Wo)


# TODO(synk): LambdaLayer can wrap arbitrary Python callables; only the
# option-A shortcut lambda actually used in samll_resnet.py is implemented.
# TODO(synk): for best end-to-end perf this pure data-movement op should be
# fused into the adjacent residual-add / conv epilogue rather than paying a
# standalone HBM read+write of the activation.


if __name__ == "__main__":
    root = jax.random.PRNGKey(0)

    def _check(key, N, C, H, W, planes, block_n=None):
        x = jax.random.normal(key, (N, C, H, W), dtype=jnp.float32)
        out = jax.block_until_ready(
            lambda_layer_option_a(x, planes, block_n=block_n))
        pad = planes // 4
        ref = jnp.pad(x[:, :, ::2, ::2], ((0, 0), (pad, pad), (0, 0), (0, 0)))
        assert out.shape == ref.shape, (out.shape, ref.shape)
        assert jnp.allclose(out, ref, atol=1e-6), float(jnp.abs(out - ref).max())

    keys = jax.random.split(root, 4)
    # Realistic option-A shortcut shape from small_resnet (16 -> 32 planes):
    # lane-dense output (Ho*Wo = 256), single big block on 1-TC chips.
    _check(keys[0], N=4, C=16, H=32, W=32, planes=32)
    # Small case: C not a multiple of 8, pad not a multiple of 8, HoWo < 128.
    _check(keys[1], N=2, C=4, H=16, W=16, planes=8)
    # Ragged final grid block (N % NB != 0) — relies on Pallas block masking.
    _check(keys[2], N=3, C=16, H=32, W=32, planes=32, block_n=2)
    # Odd spatial sizes (ceil semantics of ::2) + misaligned pad path.
    _check(keys[3], N=2, C=8, H=17, W=19, planes=16)

    print("KERNEL_OK")
</pallas_src>

<mosaic_0001>
module attributes {stable_mosaic.version = 11 : i64} {
  func.func @_option_a_shortcut_kernel(%arg0: i32, %arg1: memref<64x512xf32, #tpu.memory_space<vmem>>, %arg2: memref<512x256xf32, #tpu.memory_space<vmem>>, %arg3: memref<4x32x256xf32, #tpu.memory_space<vmem>>) attributes {dimension_semantics = [#tpu.dimension_semantics<parallel>], iteration_bounds = array<i64: 1>, scalar_prefetch = 0 : i64, scratch_operands = 0 : i64, tpu.core_type = #tpu.core_type<tc>, window_params = [{transform_indices = @transform_0, window_bounds = array<i64: 64, 512>}, {pipeline_mode = #tpu.pipeline_mode<synchronous>, transform_indices = @transform_1, window_bounds = array<i64: 512, 256>}, {transform_indices = @transform_2, window_bounds = array<i64: 4, 32, 256>}]} {
    %c0 = arith.constant 0 : index
    %c0_0 = arith.constant 0 : index
    %0 = vector.load %arg1[%c0, %c0_0] : memref<64x512xf32, #tpu.memory_space<vmem>>, vector<64x512xf32>
    %c0_1 = arith.constant 0 : index
    %c0_2 = arith.constant 0 : index
    %1 = vector.load %arg2[%c0_1, %c0_2] : memref<512x256xf32, #tpu.memory_space<vmem>>, vector<512x256xf32>
    %cst = arith.constant dense<0.000000e+00> : vector<64x256xf32>
    %2 = tpu.matmul %0, %1, %cst {dimension_numbers = #tpu.dot_dimension_numbers<[1], [0], [0], [1], [0, 0, 1, 1], [], []>} : vector<64x512xf32>, vector<512x256xf32>, vector<64x256xf32> -> vector<64x256xf32>
    %3 = vector.shape_cast %2 : vector<64x256xf32> to vector<4x16x256xf32>
    %cst_3 = arith.constant 0.000000e+00 : f32
    %4 = vector.broadcast %cst_3 : f32 to vector<4x8x256xf32>
    %c0_4 = arith.constant 0 : index
    %c0_5 = arith.constant 0 : index
    %c0_6 = arith.constant 0 : index
    %5 = vector.load %arg3[%c0_4, %c0_5, %c0_6] : memref<4x32x256xf32, #tpu.memory_space<vmem>>, vector<4x8x256xf32>
    tpu.vector_store %arg3[%c0_4, %c0_5, %c0_6], %4 {strides = array<i32>} : memref<4x32x256xf32, #tpu.memory_space<vmem>>, vector<4x8x256xf32>,
    %c0_7 = arith.constant 0 : index
    %c24 = arith.constant 24 : index
    %c0_8 = arith.constant 0 : index
    %6 = vector.load %arg3[%c0_7, %c24, %c0_8] : memref<4x32x256xf32, #tpu.memory_space<vmem>>, vector<4x8x256xf32>
    tpu.vector_store %arg3[%c0_7, %c24, %c0_8], %4 {strides = array<i32>} : memref<4x32x256xf32, #tpu.memory_space<vmem>>, vector<4x8x256xf32>,
    %c0_9 = arith.constant 0 : index
    %c8 = arith.constant 8 : index
    %c0_10 = arith.constant 0 : index
    %7 = vector.load %arg3[%c0_9, %c8, %c0_10] : memref<4x32x256xf32, #tpu.memory_space<vmem>>, vector<4x16x256xf32>
    tpu.vector_store %arg3[%c0_9, %c8, %c0_10], %3 {strides = array<i32>} : memref<4x32x256xf32, #tpu.memory_space<vmem>>, vector<4x16x256xf32>,
    return
  }
  func.func @transform_0(%arg0: i32) -> (i32, i32) {
    %c0_i32 = arith.constant 0 : i32
    %c0_i32_0 = arith.constant 0 : i32
    return %arg0, %c0_i32 : i32, i32
  }
  func.func @transform_1(%arg0: i32) -> (i32, i32) {
    %c0_i32 = arith.constant 0 : i32
    %c0_i32_0 = arith.constant 0 : i32
    %c0_i32_1 = arith.constant 0 : i32
    return %c0_i32, %c0_i32_0 : i32, i32
  }
  func.func @transform_2(%arg0: i32) -> (i32, i32, i32) {
    %c0_i32 = arith.constant 0 : i32
    %c0_i32_0 = arith.constant 0 : i32
    %c0_i32_1 = arith.constant 0 : i32
    return %arg0, %c0_i32, %c0_i32_0 : i32, i32, i32
  }
}

module attributes {stable_mosaic.version = 11 : i64} {
  func.func @_option_a_shortcut_kernel(%arg0: i32, %arg1: memref<64x512xf32, #tpu.memory_space<vmem>>, %arg2: memref<512x256xf32, #tpu.memory_space<vmem>>, %arg3: memref<4x32x256xf32, #tpu.memory_space<vmem>>) attributes {dimension_semantics = [#tpu.dimension_semantics<parallel>], iteration_bounds = array<i64: 1>, scalar_prefetch = 0 : i64, scratch_operands = 0 : i64, tpu.core_type = #tpu.core_type<tc>, window_params = [{transform_indices = @transform_0, window_bounds = array<i64: 64, 512>}, {pipeline_mode = #tpu.pipeline_mode<synchronous>, transform_indices = @transform_1, window_bounds = array<i64: 512, 256>}, {transform_indices = @transform_2, window_bounds = array<i64: 4, 32, 256>}]} {
    %c0 = arith.constant 0 : index
    %c0_0 = arith.constant 0 : index
    %0 = vector.load %arg1[%c0, %c0_0] : memref<64x512xf32, #tpu.memory_space<vmem>>, vector<64x512xf32>
    %c0_1 = arith.constant 0 : index
    %c0_2 = arith.constant 0 : index
    %1 = vector.load %arg2[%c0_1, %c0_2] : memref<512x256xf32, #tpu.memory_space<vmem>>, vector<512x256xf32>
    %cst = arith.constant dense<0.000000e+00> : vector<64x256xf32>
    %2 = tpu.matmul %0, %1, %cst {dimension_numbers = #tpu.dot_dimension_numbers<[1], [0], [0], [1], [0, 0, 1, 1], [], []>} : vector<64x512xf32>, vector<512x256xf32>, vector<64x256xf32> -> vector<64x256xf32>
    %3 = vector.shape_cast %2 : vector<64x256xf32> to vector<4x16x256xf32>
    %cst_3 = arith.constant 0.000000e+00 : f32
    %4 = vector.broadcast %cst_3 : f32 to vector<4x8x256xf32>
    %c0_4 = arith.constant 0 : index
    %c0_5 = arith.constant 0 : index
    %c0_6 = arith.constant 0 : index
    %5 = vector.load %arg3[%c0_4, %c0_5, %c0_6] : memref<4x32x256xf32, #tpu.memory_space<vmem>>, vector<4x8x256xf32>
    tpu.vector_store %arg3[%c0_4, %c0_5, %c0_6], %4 {strides = array<i32>} : memref<4x32x256xf32, #tpu.memory_space<vmem>>, vector<4x8x256xf32>,
    %c0_7 = arith.constant 0 : index
    %c24 = arith.constant 24 : index
    %c0_8 = arith.constant 0 : index
    %6 = vector.load %arg3[%c0_7, %c24, %c0_8] : memref<4x32x256xf32, #tpu.memory_space<vmem>>, vector<4x8x256xf32>
    tpu.vector_store %arg3[%c0_7, %c24, %c0_8], %4 {strides = array<i32>} : memref<4x32x256xf32, #tpu.memory_space<vmem>>, vector<4x8x256xf32>,
    %c0_9 = arith.constant 0 : index
    %c8 = arith.constant 8 : index
    %c0_10 = arith.constant 0 : index
    %7 = vector.load %arg3[%c0_9, %c8, %c0_10] : memref<4x32x256xf32, #tpu.memory_space<vmem>>, vector<4x16x256xf32>
    tpu.vector_store %arg3[%c0_9, %c8, %c0_10], %3 {strides = array<i32>} : memref<4x32x256xf32, #tpu.memory_space<vmem>>, vector<4x16x256xf32>,
    return
  }
  func.func @transform_0(%arg0: i32) -> (i32, i32) {
    %c0_i32 = arith.constant 0 : i32
    %c0_i32_0 = arith.constant 0 : i32
    return %arg0, %c0_i32 : i32, i32
  }
  func.func @transform_1(%arg0: i32) -> (i32, i32) {
    %c0_i32 = arith.constant 0 : i32
    %c0_i32_0 = arith.constant 0 : i32
    %c0_i32_1 = arith.constant 0 : i32
    return %c0_i32, %c0_i32_0 : i32, i32
  }
  func.func @transform_2(%arg0: i32) -> (i32, i32, i32) {
    %c0_i32 = arith.constant 0 : i32
    %c0_i32_0 = arith.constant 0 : i32
    %c0_i32_1 = arith.constant 0 : i32
    return %arg0, %c0_i32, %c0_i32_0 : i32, i32, i32
  }
}

</mosaic_0001>

<llo_original>
// kernel: tpu_custom_call.1
$region0: #{tpu_custom_call.1}
  #allocation0 [shape = 'u32[]', space=smem, size = 0x4, offset = 0x4, fixed_abs, tag = 'smem constant byte address 0x4 - core index']
  #allocation1 [shape = 'u32[72,128]{1,0:T(1,128)}', space=vmem, size = 0x9000, scoped, tag = 'internal scratch']
  %s0 = inlined_call_operand.hbm [shape: f32[64,512], index: 0, kind: input, shape index: {}]
  %s1 = inlined_call_operand.hbm [shape: f32[512,256], index: 1, kind: input, shape index: {}]
  %s2 = inlined_call_operand.hbm [shape: f32[4,32,256], index: 2, kind: output, shape index: {}]
  %s3 = sld [smem:[#allocation0]]
  $region26: #{tpu_custom_call.1} parent=0
    _
  %s5 = ssub.s32 1, %s3
  %s6 = scalar_select 0, %s5, %s3
  $region1: #{tpu_custom_call.1} parent=0
    #allocation2 [shape = 'u8[131072]{0}', space=vmem, size = 0x20000, scoped, tag = 'input window, operand 0, single buffered']
    #allocation3 [shape = 's32[1]{0}', space=sflag, size = 0x4, scoped, tag = 'scoped memory for tpu_custom_call.1']
    #allocation4 [shape = 's32[1]{0}', space=sflag, size = 0x4, scoped, tag = 'scoped memory for tpu_custom_call.1']
    #allocation5 [shape = 'u8[524288]{0}', space=vmem, size = 0x80000, scoped, tag = 'input window, operand 1, single buffered']
    #allocation6 [shape = 's32[1]{0}', space=sflag, size = 0x4, scoped, tag = 'scoped memory for tpu_custom_call.1']
    #allocation7 [shape = 'u8[131072]{0}', space=vmem, size = 0x20000, scoped, tag = 'output window, operand 0, single buffered']
    %7 = vsyncpa [#allocation3], 0
    %8 = vsyncpa [#allocation6], 0
    %9 = vsyncpa [#allocation4], 0
    // Predicated region
    $region2: #{tpu_custom_call.1} parent=1 // pred_check
      _
    $region3: #{tpu_custom_call.1} parent=1 // pred_check_branch
      %11 = sbr.rel (0) target = $region5
    $region4: #{tpu_custom_call.1} parent=1 // pred_region
      %13 = vsyncadd [#allocation3], 0
      %s14 = sshll.u32 %s0, 4
      %s15 = int_to_ptr.hbm [resolvable:$true] %s14
      %s16 = sshll.u32 [#allocation2], 4
      %s17 = int_to_ptr.vmem [resolvable:$true] %s16
      %22 = dma.hbm_to_vmem [thread:$0]  %s15, 4096, %s17, [#allocation3], 512, 512, 32
    $region5: #{tpu_custom_call.1} parent=1 // pred_fallthru
      _
    // Predicated region
    $region6: #{tpu_custom_call.1} parent=1 // pred_check
      _
    $region7: #{tpu_custom_call.1} parent=1 // pred_check_branch
      %24 = sbr.rel (0) target = $region9
    $region8: #{tpu_custom_call.1} parent=1 // pred_region
      %26 = vsyncadd [#allocation6], 0
      %s27 = sshll.u32 %s1, 4
      %s28 = int_to_ptr.hbm [resolvable:$true] %s27
      %s29 = sshll.u32 [#allocation5], 4
      %s30 = int_to_ptr.vmem [resolvable:$true] %s29
      %35 = dma.hbm_to_vmem [thread:$0]  %s28, 16384, %s30, [#allocation6], 256, 256, 16
    $region9: #{tpu_custom_call.1} parent=1 // pred_fallthru
      _
    // Predicated region
    $region10: #{tpu_custom_call.1} parent=1 // pred_check
      _
    $region11: #{tpu_custom_call.1} parent=1 // pred_check_branch
      %37 = sbr.rel (0) target = $region13
    $region12: #{tpu_custom_call.1} parent=1 // pred_region
      %39 = dma.done [#allocation3], 4096
    $region13: #{tpu_custom_call.1} parent=1 // pred_fallthru
      _
    // Predicated region
    $region14: #{tpu_custom_call.1} parent=1 // pred_check
      _
    $region15: #{tpu_custom_call.1} parent=1 // pred_check_branch
      %41 = sbr.rel (0) target = $region17
    $region16: #{tpu_custom_call.1} parent=1 // pred_region
      %43 = dma.done [#allocation6], 16384
    $region17: #{tpu_custom_call.1} parent=1 // pred_fallthru
      _
    %v44 = vld [vmem:[#allocation2] sm:$0xff]
    %v45 = vld [vmem:[#allocation2 + $0x8] sm:$0xff]
    %v46 = vld [vmem:[#allocation2 + $0x10] sm:$0xff]
    %v47 = vld [vmem:[#allocation2 + $0x18] sm:$0xff]
    %v48 = vld [vmem:[#allocation2 + $0x20] sm:$0xff]
    %v49 = vld [vmem:[#allocation2 + $0x28] sm:$0xff]
    %v50 = vld [vmem:[#allocation2 + $0x30] sm:$0xff]
    %v51 = vld [vmem:[#allocation2 + $0x38] sm:$0xff]
    %v52 = vld [vmem:[#allocation2 + $0x40] sm:$0xff]
    %v53 = vld [vmem:[#allocation2 + $0x48] sm:$0xff]
    %v54 = vld [vmem:[#allocation2 + $0x50] sm:$0xff]
    %v55 = vld [vmem:[#allocation2 + $0x58] sm:$0xff]
    %v56 = vld [vmem:[#allocation2 + $0x60] sm:$0xff]
    %v57 = vld [vmem:[#allocation2 + $0x68] sm:$0xff]
    %v58 = vld [vmem:[#allocation2 + $0x70] sm:$0xff]
    %v59 = vld [vmem:[#allocation2 + $0x78] sm:$0xff]
    %v60 = vld [vmem:[#allocation2 + $0x80] sm:$0xff]
    %v61 = vld [vmem:[#allocation2 + $0x88] sm:$0xff]
    %v62 = vld [vmem:[#allocation2 + $0x90] sm:$0xff]
    %v63 = vld [vmem:[#allocation2 + $0x98] sm:$0xff]
    %v64 = vld [vmem:[#allocation2 + $0xa0] sm:$0xff]
    %v65 = vld [vmem:[#allocation2 + $0xa8] sm:$0xff]
    %v66 = vld [vmem:[#allocation2 + $0xb0] sm:$0xff]
    %v67 = vld [vmem:[#allocation2 + $0xb8] sm:$0xff]
    %v68 = vld [vmem:[#allocation2 + $0xc0] sm:$0xff]
    %v69 = vld [vmem:[#allocation2 + $0xc8] sm:$0xff]
    %v70 = vld [vmem:[#allocation2 + $0xd0] sm:$0xff]
    %v71 = vld [vmem:[#allocation2 + $0xd8] sm:$0xff]
    %v72 = vld [vmem:[#allocation2 + $0xe0] sm:$0xff]
    %v73 = vld [vmem:[#allocation2 + $0xe8] sm:$0xff]
    %v74 = vld [vmem:[#allocation2 + $0xf0] sm:$0xff]
    %v75 = vld [vmem:[#allocation2 + $0xf8] sm:$0xff]
    %v76 = vld [vmem:[#allocation5] sm:$0xff]
    %v77 = vld [vmem:[#allocation5 + $0x8] sm:$0xff]
    %v78 = vld [vmem:[#allocation5 + $0x10] sm:$0xff]
    %v79 = vld [vmem:[#allocation5 + $0x18] sm:$0xff]
    %v80 = vld [vmem:[#allocation5 + $0x20] sm:$0xff]
    %v81 = vld [vmem:[#allocation5 + $0x28] sm:$0xff]
    %v82 = vld [vmem:[#allocation5 + $0x30] sm:$0xff]
    %v83 = vld [vmem:[#allocation5 + $0x38] sm:$0xff]
    %v84 = vld [vmem:[#allocation5 + $0x40] sm:$0xff]
    %v85 = vld [vmem:[#allocation5 + $0x48] sm:$0xff]
    %v86 = vld [vmem:[#allocation5 + $0x50] sm:$0xff]
    %v87 = vld [vmem:[#allocation5 + $0x58] sm:$0xff]
    %v88 = vld [vmem:[#allocation5 + $0x60] sm:$0xff]
    %v89 = vld [vmem:[#allocation5 + $0x68] sm:$0xff]
    %v90 = vld [vmem:[#allocation5 + $0x70] sm:$0xff]
    %v91 = vld [vmem:[#allocation5 + $0x78] sm:$0xff]
    %v92 = vld [vmem:[#allocation5 + $0x80] sm:$0xff]
    %v93 = vld [vmem:[#allocation5 + $0x88] sm:$0xff]
    %v94 = vld [vmem:[#allocation5 + $0x90] sm:$0xff]
    %v95 = vld [vmem:[#allocation5 + $0x98] sm:$0xff]
    %v96 = vld [vmem:[#allocation5 + $0xa0] sm:$0xff]
    %v97 = vld [vmem:[#allocation5 + $0xa8] sm:$0xff]
    %v98 = vld [vmem:[#allocation5 + $0xb0] sm:$0xff]
    %v99 = vld [vmem:[#allocation5 + $0xb8] sm:$0xff]
    %v100 = vld [vmem:[#allocation5 + $0xc0] sm:$0xff]
    %v101 = vld [vmem:[#allocation5 + $0xc8] sm:$0xff]
    %v102 = vld [vmem:[#allocation5 + $0xd0] sm:$0xff]
    %v103 = vld [vmem:[#allocation5 + $0xd8] sm:$0xff]
    %v104 = vld [vmem:[#allocation5 + $0xe0] sm:$0xff]
    %v105 = vld [vmem:[#allocation5 + $0xe8] sm:$0xff]
    %v106 = vld [vmem:[#allocation5 + $0xf0] sm:$0xff]
    %v107 = vld [vmem:[#allocation5 + $0xf8] sm:$0xff]
    %v108 = vld [vmem:[#allocation5 + $0x100] sm:$0xff]
    %v109 = vld [vmem:[#allocation5 + $0x108] sm:$0xff]
    %v110 = vld [vmem:[#allocation5 + $0x110] sm:$0xff]
    %v111 = vld [vmem:[#allocation5 + $0x118] sm:$0xff]
    %v112 = vld [vmem:[#allocation5 + $0x120] sm:$0xff]
    %v113 = vld [vmem:[#allocation5 + $0x128] sm:$0xff]
    %v114 = vld [vmem:[#allocation5 + $0x130] sm:$0xff]
    %v115 = vld [vmem:[#allocation5 + $0x138] sm:$0xff]
    %v116 = vld [vmem:[#allocation5 + $0x140] sm:$0xff]
    %v117 = vld [vmem:[#allocation5 + $0x148] sm:$0xff]
    %v118 = vld [vmem:[#allocation5 + $0x150] sm:$0xff]
    %v119 = vld [vmem:[#allocation5 + $0x158] sm:$0xff]
    %v120 = vld [vmem:[#allocation5 + $0x160] sm:$0xff]
    %v121 = vld [vmem:[#allocation5 + $0x168] sm:$0xff]
    %v122 = vld [vmem:[#allocation5 + $0x170] sm:$0xff]
    %v123 = vld [vmem:[#allocation5 + $0x178] sm:$0xff]
    %v124 = vld [vmem:[#allocation5 + $0x180] sm:$0xff]
    %v125 = vld [vmem:[#allocation5 + $0x188] sm:$0xff]
    %v126 = vld [vmem:[#allocation5 + $0x190] sm:$0xff]
    %v127 = vld [vmem:[#allocation5 + $0x198] sm:$0xff]
    %v128 = vld [vmem:[#allocation5 + $0x1a0] sm:$0xff]
    %v129 = vld [vmem:[#allocation5 + $0x1a8] sm:$0xff]
    %v130 = vld [vmem:[#allocation5 + $0x1b0] sm:$0xff]
    %v131 = vld [vmem:[#allocation5 + $0x1b8] sm:$0xff]
    %v132 = vld [vmem:[#allocation5 + $0x1c0] sm:$0xff]
    %v133 = vld [vmem:[#allocation5 + $0x1c8] sm:$0xff]
    %v134 = vld [vmem:[#allocation5 + $0x1d0] sm:$0xff]
    %v135 = vld [vmem:[#allocation5 + $0x1d8] sm:$0xff]
    %v136 = vld [vmem:[#allocation5 + $0x1e0] sm:$0xff]
    %v137 = vld [vmem:[#allocation5 + $0x1e8] sm:$0xff]
    %v138 = vld [vmem:[#allocation5 + $0x1f0] sm:$0xff]
    %v139 = vld [vmem:[#allocation5 + $0x1f8] sm:$0xff]
    %v140 = vld [vmem:[#allocation5 + $0x200] sm:$0xff]
    %v141 = vld [vmem:[#allocation5 + $0x208] sm:$0xff]
    %v142 = vld [vmem:[#allocation5 + $0x210] sm:$0xff]
    %v143 = vld [vmem:[#allocation5 + $0x218] sm:$0xff]
    %v144 = vld [vmem:[#allocation5 + $0x220] sm:$0xff]
    %v145 = vld [vmem:[#allocation5 + $0x228] sm:$0xff]
    %v146 = vld [vmem:[#allocation5 + $0x230] sm:$0xff]
    %v147 = vld [vmem:[#allocation5 + $0x238] sm:$0xff]
    %v148 = vld [vmem:[#allocation5 + $0x240] sm:$0xff]
    %v149 = vld [vmem:[#allocation5 + $0x248] sm:$0xff]
    %v150 = vld [vmem:[#allocation5 + $0x250] sm:$0xff]
    %v151 = vld [vmem:[#allocation5 + $0x258] sm:$0xff]
    %v152 = vld [vmem:[#allocation5 + $0x260] sm:$0xff]
    %v153 = vld [vmem:[#allocation5 + $0x268] sm:$0xff]
    %v154 = vld [vmem:[#allocation5 + $0x270] sm:$0xff]
    %v155 = vld [vmem:[#allocation5 + $0x278] sm:$0xff]
    %v156 = vld [vmem:[#allocation5 + $0x280] sm:$0xff]
    %v157 = vld [vmem:[#allocation5 + $0x288] sm:$0xff]
    %v158 = vld [vmem:[#allocation5 + $0x290] sm:$0xff]
    %v159 = vld [vmem:[#allocation5 + $0x298] sm:$0xff]
    %v160 = vld [vmem:[#allocation5 + $0x2a0] sm:$0xff]
    %v161 = vld [vmem:[#allocation5 + $0x2a8] sm:$0xff]
    %v162 = vld [vmem:[#allocation5 + $0x2b0] sm:$0xff]
    %v163 = vld [vmem:[#allocation5 + $0x2b8] sm:$0xff]
    %v164 = vld [vmem:[#allocation5 + $0x2c0] sm:$0xff]
    %v165 = vld [vmem:[#allocation5 + $0x2c8] sm:$0xff]
    %v166 = vld [vmem:[#allocation5 + $0x2d0] sm:$0xff]
    %v167 = vld [vmem:[#allocation5 + $0x2d8] sm:$0xff]
    %v168 = vld [vmem:[#allocation5 + $0x2e0] sm:$0xff]
    %v169 = vld [vmem:[#allocation5 + $0x2e8] sm:$0xff]
    %v170 = vld [vmem:[#allocation5 + $0x2f0] sm:$0xff]
    %v171 = vld [vmem:[#allocation5 + $0x2f8] sm:$0xff]
    %v172 = vld [vmem:[#allocation5 + $0x300] sm:$0xff]
    %v173 = vld [vmem:[#allocation5 + $0x308] sm:$0xff]
    %v174 = vld [vmem:[#allocation5 + $0x310] sm:$0xff]
    %v175 = vld [vmem:[#allocation5 + $0x318] sm:$0xff]
    %v176 = vld [vmem:[#allocation5 + $0x320] sm:$0xff]
    %v177 = vld [vmem:[#allocation5 + $0x328] sm:$0xff]
    %v178 = vld [vmem:[#allocation5 + $0x330] sm:$0xff]
    %v179 = vld [vmem:[#allocation5 + $0x338] sm:$0xff]
    %v180 = vld [vmem:[#allocation5 + $0x340] sm:$0xff]
    %v181 = vld [vmem:[#allocation5 + $0x348] sm:$0xff]
    %v182 = vld [vmem:[#allocation5 + $0x350] sm:$0xff]
    %v183 = vld [vmem:[#allocation5 + $0x358] sm:$0xff]
    %v184 = vld [vmem:[#allocation5 + $0x360] sm:$0xff]
    %v185 = vld [vmem:[#allocation5 + $0x368] sm:$0xff]
    %v186 = vld [vmem:[#allocation5 + $0x370] sm:$0xff]
    %v187 = vld [vmem:[#allocation5 + $0x378] sm:$0xff]
    %v188 = vld [vmem:[#allocation5 + $0x380] sm:$0xff]
    %v189 = vld [vmem:[#allocation5 + $0x388] sm:$0xff]
    %v190 = vld [vmem:[#allocation5 + $0x390] sm:$0xff]
    %v191 = vld [vmem:[#allocation5 + $0x398] sm:$0xff]
    %v192 = vld [vmem:[#allocation5 + $0x3a0] sm:$0xff]
    %v193 = vld [vmem:[#allocation5 + $0x3a8] sm:$0xff]
    %v194 = vld [vmem:[#allocation5 + $0x3b0] sm:$0xff]
    %v195 = vld [vmem:[#allocation5 + $0x3b8] sm:$0xff]
    %v196 = vld [vmem:[#allocation5 + $0x3c0] sm:$0xff]
    %v197 = vld [vmem:[#allocation5 + $0x3c8] sm:$0xff]
    %v198 = vld [vmem:[#allocation5 + $0x3d0] sm:$0xff]
    %v199 = vld [vmem:[#allocation5 + $0x3d8] sm:$0xff]
    %v200 = vld [vmem:[#allocation5 + $0x3e0] sm:$0xff]
    %v201 = vld [vmem:[#allocation5 + $0x3e8] sm:$0xff]
    %v202 = vld [vmem:[#allocation5 + $0x3f0] sm:$0xff]
    %v203 = vld [vmem:[#allocation5 + $0x3f8] sm:$0xff]
    %204 = vmatpush.msra.mxu0 %v106
    %205 = vmatpush.msra.mxu0 %v104
    %206 = vmatpush.msra.mxu0 %v102
    %207 = vmatpush.msra.mxu0 %v100
    %208 = vmatpush.msra.mxu0 %v98
    %209 = vmatpush.msra.mxu0 %v96
    %210 = vmatpush.msra.mxu0 %v94
    %211 = vmatpush.msra.mxu0 %v92
    %212 = vmatpush.msra.mxu0 %v90
    %213 = vmatpush.msra.mxu0 %v88
    %214 = vmatpush.msra.mxu0 %v86
    %215 = vmatpush.msra.mxu0 %v84
    %216 = vmatpush.msra.mxu0 %v82
    %217 = vmatpush.msra.mxu0 %v80
    %218 = vmatpush.msra.mxu0 %v78
    %219 = vmatpush.msra.mxu0 %v76
    %220 = vmatmul.f32.gmra.mxu0 %v44
    %v221 = vpop.f32.mrf.mxu0
    %v222 = vadd.f32 0.0, %v221
    %223 = vmatmul.f32.gmra.mxu0 %v48
    %v224 = vpop.f32.mrf.mxu0
    %v225 = vadd.f32 0.0, %v224
    %226 = vmatmul.f32.gmra.mxu0 %v52
    %v227 = vpop.f32.mrf.mxu0
    %v228 = vadd.f32 0.0, %v227
    %229 = vmatmul.f32.gmra.mxu0 %v56
    %v230 = vpop.f32.mrf.mxu0
    %v231 = vadd.f32 0.0, %v230
    %232 = vmatmul.f32.gmra.mxu0 %v60
    %v233 = vpop.f32.mrf.mxu0
    %v234 = vadd.f32 0.0, %v233
    %235 = vmatmul.f32.gmra.mxu0 %v64
    %v236 = vpop.f32.mrf.mxu0
    %v237 = vadd.f32 0.0, %v236
    %238 = vmatmul.f32.gmra.mxu0 %v68
    %v239 = vpop.f32.mrf.mxu0
    %v240 = vadd.f32 0.0, %v239
    %241 = vmatmul.f32.gmra.mxu0 %v72
    %v242 = vpop.f32.mrf.mxu0
    %v243 = vadd.f32 0.0, %v242
    %244 = vdwg.mxu0
    %245 = vmatpush.msra.mxu0 %v138
    %246 = vmatpush.msra.mxu0 %v136
    %247 = vmatpush.msra.mxu0 %v134
    %248 = vmatpush.msra.mxu0 %v132
    %249 = vmatpush.msra.mxu0 %v130
    %250 = vmatpush.msra.mxu0 %v128
    %251 = vmatpush.msra.mxu0 %v126
    %252 = vmatpush.msra.mxu0 %v124
    %253 = vmatpush.msra.mxu0 %v122
    %254 = vmatpush.msra.mxu0 %v120
    %255 = vmatpush.msra.mxu0 %v118
    %256 = vmatpush.msra.mxu0 %v116
    %257 = vmatpush.msra.mxu0 %v114
    %258 = vmatpush.msra.mxu0 %v112
    %259 = vmatpush.msra.mxu0 %v110
    %260 = vmatpush.msra.mxu0 %v108
    %261 = vmatmul.f32.gmra.mxu0 %v45
    %v262 = vpop.f32.mrf.mxu0
    %v263 = vadd.f32 %v222, %v262
    %264 = vmatmul.f32.gmra.mxu0 %v49
    %v265 = vpop.f32.mrf.mxu0
    %v266 = vadd.f32 %v225, %v265
    %267 = vmatmul.f32.gmra.mxu0 %v53
    %v268 = vpop.f32.mrf.mxu0
    %v269 = vadd.f32 %v228, %v268
    %270 = vmatmul.f32.gmra.mxu0 %v57
    %v271 = vpop.f32.mrf.mxu0
    %v272 = vadd.f32 %v231, %v271
    %273 = vmatmul.f32.gmra.mxu0 %v61
    %v274 = vpop.f32.mrf.mxu0
    %v275 = vadd.f32 %v234, %v274
    %276 = vmatmul.f32.gmra.mxu0 %v65
    %v277 = vpop.f32.mrf.mxu0
    %v278 = vadd.f32 %v237, %v277
    %279 = vmatmul.f32.gmra.mxu0 %v69
    %v280 = vpop.f32.mrf.mxu0
    %v281 = vadd.f32 %v240, %v280
    %282 = vmatmul.f32.gmra.mxu0 %v73
    %v283 = vpop.f32.mrf.mxu0
    %v284 = vadd.f32 %v243, %v283
    %285 = vdwg.mxu0
    %286 = vmatpush.msra.mxu0 %v170
    %287 = vmatpush.msra.mxu0 %v168
    %288 = vmatpush.msra.mxu0 %v166
    %289 = vmatpush.msra.mxu0 %v164
    %290 = vmatpush.msra.mxu0 %v162
    %291 = vmatpush.msra.mxu0 %v160
    %292 = vmatpush.msra.mxu0 %v158
    %293 = vmatpush.msra.mxu0 %v156
    %294 = vmatpush.msra.mxu0 %v154
    %295 = vmatpush.msra.mxu0 %v152
    %296 = vmatpush.msra.mxu0 %v150
    %297 = vmatpush.msra.mxu0 %v148
    %298 = vmatpush.msra.mxu0 %v146
    %299 = vmatpush.msra.mxu0 %v144
    %300 = vmatpush.msra.mxu0 %v142
    %301 = vmatpush.msra.mxu0 %v140
    %302 = vmatmul.f32.gmra.mxu0 %v46
    %v303 = vpop.f32.mrf.mxu0
    %v304 = vadd.f32 %v263, %v303
    %305 = vmatmul.f32.gmra.mxu0 %v50
    %v306 = vpop.f32.mrf.mxu0
    %v307 = vadd.f32 %v266, %v306
    %308 = vmatmul.f32.gmra.mxu0 %v54
    %v309 = vpop.f32.mrf.mxu0
    %v310 = vadd.f32 %v269, %v309
    %311 = vmatmul.f32.gmra.mxu0 %v58
    %v312 = vpop.f32.mrf.mxu0
    %v313 = vadd.f32 %v272, %v312
    %314 = vmatmul.f32.gmra.mxu0 %v62
    %v315 = vpop.f32.mrf.mxu0
    %v316 = vadd.f32 %v275, %v315
    %317 = vmatmul.f32.gmra.mxu0 %v66
    %v318 = vpop.f32.mrf.mxu0
    %v319 = vadd.f32 %v278, %v318
    %320 = vmatmul.f32.gmra.mxu0 %v70
    %v321 = vpop.f32.mrf.mxu0
    %v322 = vadd.f32 %v281, %v321
    %323 = vmatmul.f32.gmra.mxu0 %v74
    %v324 = vpop.f32.mrf.mxu0
    %v325 = vadd.f32 %v284, %v324
    %326 = vdwg.mxu0
    %327 = vmatpush.msra.mxu0 %v202
    %328 = vmatpush.msra.mxu0 %v200
    %329 = vmatpush.msra.mxu0 %v198
    %330 = vmatpush.msra.mxu0 %v196
    %331 = vmatpush.msra.mxu0 %v194
    %332 = vmatpush.msra.mxu0 %v192
    %333 = vmatpush.msra.mxu0 %v190
    %334 = vmatpush.msra.mxu0 %v188
    %335 = vmatpush.msra.mxu0 %v186
    %336 = vmatpush.msra.mxu0 %v184
    %337 = vmatpush.msra.mxu0 %v182
    %338 = vmatpush.msra.mxu0 %v180
    %339 = vmatpush.msra.mxu0 %v178
    %340 = vmatpush.msra.mxu0 %v176
    %341 = vmatpush.msra.mxu0 %v174
    %342 = vmatpush.msra.mxu0 %v172
    %343 = vmatmul.f32.gmra.mxu0 %v47
    %v344 = vpop.f32.mrf.mxu0
    %v345 = vadd.f32 %v304, %v344
    %346 = vmatmul.f32.gmra.mxu0 %v51
    %v347 = vpop.f32.mrf.mxu0
    %v348 = vadd.f32 %v307, %v347
    %349 = vmatmul.f32.gmra.mxu0 %v55
    %v350 = vpop.f32.mrf.mxu0
    %v351 = vadd.f32 %v310, %v350
    %352 = vmatmul.f32.gmra.mxu0 %v59
    %v353 = vpop.f32.mrf.mxu0
    %v354 = vadd.f32 %v313, %v353
    %355 = vmatmul.f32.gmra.mxu0 %v63
    %v356 = vpop.f32.mrf.mxu0
    %v357 = vadd.f32 %v316, %v356
    %358 = vmatmul.f32.gmra.mxu0 %v67
    %v359 = vpop.f32.mrf.mxu0
    %v360 = vadd.f32 %v319, %v359
    %361 = vmatmul.f32.gmra.mxu0 %v71
    %v362 = vpop.f32.mrf.mxu0
    %v363 = vadd.f32 %v322, %v362
    %364 = vmatmul.f32.gmra.mxu0 %v75
    %v365 = vpop.f32.mrf.mxu0
    %v366 = vadd.f32 %v325, %v365
    %367 = vdwg.mxu0
    %368 = vmatpush.msra.mxu0 %v107
    %369 = vmatpush.msra.mxu0 %v105
    %370 = vmatpush.msra.mxu0 %v103
    %371 = vmatpush.msra.mxu0 %v101
    %372 = vmatpush.msra.mxu0 %v99
    %373 = vmatpush.msra.mxu0 %v97
    %374 = vmatpush.msra.mxu0 %v95
    %375 = vmatpush.msra.mxu0 %v93
    %376 = vmatpush.msra.mxu0 %v91
    %377 = vmatpush.msra.mxu0 %v89
    %378 = vmatpush.msra.mxu0 %v87
    %379 = vmatpush.msra.mxu0 %v85
    %380 = vmatpush.msra.mxu0 %v83
    %381 = vmatpush.msra.mxu0 %v81
    %382 = vmatpush.msra.mxu0 %v79
    %383 = vmatpush.msra.mxu0 %v77
    %384 = vmatmul.f32.gmra.mxu0 %v44
    %v385 = vpop.f32.mrf.mxu0
    %v386 = vadd.f32 0.0, %v385
    %387 = vmatmul.f32.gmra.mxu0 %v48
    %v388 = vpop.f32.mrf.mxu0
    %v389 = vadd.f32 0.0, %v388
    %390 = vmatmul.f32.gmra.mxu0 %v52
    %v391 = vpop.f32.mrf.mxu0
    %v392 = vadd.f32 0.0, %v391
    %393 = vmatmul.f32.gmra.mxu0 %v56
    %v394 = vpop.f32.mrf.mxu0
    %v395 = vadd.f32 0.0, %v394
    %396 = vmatmul.f32.gmra.mxu0 %v60
    %v397 = vpop.f32.mrf.mxu0
    %v398 = vadd.f32 0.0, %v397
    %399 = vmatmul.f32.gmra.mxu0 %v64
    %v400 = vpop.f32.mrf.mxu0
    %v401 = vadd.f32 0.0, %v400
    %402 = vmatmul.f32.gmra.mxu0 %v68
    %v403 = vpop.f32.mrf.mxu0
    %v404 = vadd.f32 0.0, %v403
    %405 = vmatmul.f32.gmra.mxu0 %v72
    %v406 = vpop.f32.mrf.mxu0
    %v407 = vadd.f32 0.0, %v406
    %408 = vdwg.mxu0
    %409 = vmatpush.msra.mxu0 %v139
    %410 = vmatpush.msra.mxu0 %v137
    %411 = vmatpush.msra.mxu0 %v135
    %412 = vmatpush.msra.mxu0 %v133
    %413 = vmatpush.msra.mxu0 %v131
    %414 = vmatpush.msra.mxu0 %v129
    %415 = vmatpush.msra.mxu0 %v127
    %416 = vmatpush.msra.mxu0 %v125
    %417 = vmatpush.msra.mxu0 %v123
    %418 = vmatpush.msra.mxu0 %v121
    %419 = vmatpush.msra.mxu0 %v119
    %420 = vmatpush.msra.mxu0 %v117
    %421 = vmatpush.msra.mxu0 %v115
    %422 = vmatpush.msra.mxu0 %v113
    %423 = vmatpush.msra.mxu0 %v111
    %424 = vmatpush.msra.mxu0 %v109
    %425 = vmatmul.f32.gmra.mxu0 %v45
    %v426 = vpop.f32.mrf.mxu0
    %v427 = vadd.f32 %v386, %v426
    %428 = vmatmul.f32.gmra.mxu0 %v49
    %v429 = vpop.f32.mrf.mxu0
    %v430 = vadd.f32 %v389, %v429
    %431 = vmatmul.f32.gmra.mxu0 %v53
    %v432 = vpop.f32.mrf.mxu0
    %v433 = vadd.f32 %v392, %v432
    %434 = vmatmul.f32.gmra.mxu0 %v57
    %v435 = vpop.f32.mrf.mxu0
    %v436 = vadd.f32 %v395, %v435
    %437 = vmatmul.f32.gmra.mxu0 %v61
    %v438 = vpop.f32.mrf.mxu0
    %v439 = vadd.f32 %v398, %v438
    %440 = vmatmul.f32.gmra.mxu0 %v65
    %v441 = vpop.f32.mrf.mxu0
    %v442 = vadd.f32 %v401, %v441
    %443 = vmatmul.f32.gmra.mxu0 %v69
    %v444 = vpop.f32.mrf.mxu0
    %v445 = vadd.f32 %v404, %v444
    %446 = vmatmul.f32.gmra.mxu0 %v73
    %v447 = vpop.f32.mrf.mxu0
    %v448 = vadd.f32 %v407, %v447
    %449 = vdwg.mxu0
    %450 = vmatpush.msra.mxu0 %v171
    %451 = vmatpush.msra.mxu0 %v169
    %452 = vmatpush.msra.mxu0 %v167
    %453 = vmatpush.msra.mxu0 %v165
    %454 = vmatpush.msra.mxu0 %v163
    %455 = vmatpush.msra.mxu0 %v161
    %456 = vmatpush.msra.mxu0 %v159
    %457 = vmatpush.msra.mxu0 %v157
    %458 = vmatpush.msra.mxu0 %v155
    %459 = vmatpush.msra.mxu0 %v153
    %460 = vmatpush.msra.mxu0 %v151
    %461 = vmatpush.msra.mxu0 %v149
    %462 = vmatpush.msra.mxu0 %v147
    %463 = vmatpush.msra.mxu0 %v145
    %464 = vmatpush.msra.mxu0 %v143
    %465 = vmatpush.msra.mxu0 %v141
    %466 = vmatmul.f32.gmra.mxu0 %v46
    %v467 = vpop.f32.mrf.mxu0
    %v468 = vadd.f32 %v427, %v467
    %469 = vmatmul.f32.gmra.mxu0 %v50
    %v470 = vpop.f32.mrf.mxu0
    %v471 = vadd.f32 %v430, %v470
    %472 = vmatmul.f32.gmra.mxu0 %v54
    %v473 = vpop.f32.mrf.mxu0
    %v474 = vadd.f32 %v433, %v473
    %475 = vmatmul.f32.gmra.mxu0 %v58
    %v476 = vpop.f32.mrf.mxu0
    %v477 = vadd.f32 %v436, %v476
    %478 = vmatmul.f32.gmra.mxu0 %v62
    %v479 = vpop.f32.mrf.mxu0
    %v480 = vadd.f32 %v439, %v479
    %481 = vmatmul.f32.gmra.mxu0 %v66
    %v482 = vpop.f32.mrf.mxu0
    %v483 = vadd.f32 %v442, %v482
    %484 = vmatmul.f32.gmra.mxu0 %v70
    %v485 = vpop.f32.mrf.mxu0
    %v486 = vadd.f32 %v445, %v485
    %487 = vmatmul.f32.gmra.mxu0 %v74
    %v488 = vpop.f32.mrf.mxu0
    %v489 = vadd.f32 %v448, %v488
    %490 = vdwg.mxu0
    %491 = vmatpush.msra.mxu0 %v203
    %492 = vmatpush.msra.mxu0 %v201
    %493 = vmatpush.msra.mxu0 %v199
    %494 = vmatpush.msra.mxu0 %v197
    %495 = vmatpush.msra.mxu0 %v195
    %496 = vmatpush.msra.mxu0 %v193
    %497 = vmatpush.msra.mxu0 %v191
    %498 = vmatpush.msra.mxu0 %v189
    %499 = vmatpush.msra.mxu0 %v187
    %500 = vmatpush.msra.mxu0 %v185
    %501 = vmatpush.msra.mxu0 %v183
    %502 = vmatpush.msra.mxu0 %v181
    %503 = vmatpush.msra.mxu0 %v179
    %504 = vmatpush.msra.mxu0 %v177
    %505 = vmatpush.msra.mxu0 %v175
    %506 = vmatpush.msra.mxu0 %v173
    %507 = vmatmul.f32.gmra.mxu0 %v47
    %v508 = vpop.f32.mrf.mxu0
    %v509 = vadd.f32 %v468, %v508
    %510 = vmatmul.f32.gmra.mxu0 %v51
    %v511 = vpop.f32.mrf.mxu0
    %v512 = vadd.f32 %v471, %v511
    %513 = vmatmul.f32.gmra.mxu0 %v55
    %v514 = vpop.f32.mrf.mxu0
    %v515 = vadd.f32 %v474, %v514
    %516 = vmatmul.f32.gmra.mxu0 %v59
    %v517 = vpop.f32.mrf.mxu0
    %v518 = vadd.f32 %v477, %v517
    %519 = vmatmul.f32.gmra.mxu0 %v63
    %v520 = vpop.f32.mrf.mxu0
    %v521 = vadd.f32 %v480, %v520
    %522 = vmatmul.f32.gmra.mxu0 %v67
    %v523 = vpop.f32.mrf.mxu0
    %v524 = vadd.f32 %v483, %v523
    %525 = vmatmul.f32.gmra.mxu0 %v71
    %v526 = vpop.f32.mrf.mxu0
    %v527 = vadd.f32 %v486, %v526
    %528 = vmatmul.f32.gmra.mxu0 %v75
    %v529 = vpop.f32.mrf.mxu0
    %v530 = vadd.f32 %v489, %v529
    %531 = vdwg.mxu0
    %532 = vst [vmem:[#allocation7] sm:$0xff] 0.0
    %533 = vst [vmem:[#allocation7 + $0x8] sm:$0xff] 0.0
    %534 = vst [vmem:[#allocation7 + $0x40] sm:$0xff] 0.0
    %535 = vst [vmem:[#allocation7 + $0x48] sm:$0xff] 0.0
    %536 = vst [vmem:[#allocation7 + $0x80] sm:$0xff] 0.0
    %537 = vst [vmem:[#allocation7 + $0x88] sm:$0xff] 0.0
    %538 = vst [vmem:[#allocation7 + $0xc0] sm:$0xff] 0.0
    %539 = vst [vmem:[#allocation7 + $0xc8] sm:$0xff] 0.0
    %540 = vst [vmem:[#allocation7 + $0x30] sm:$0xff] 0.0
    %541 = vst [vmem:[#allocation7 + $0x38] sm:$0xff] 0.0
    %542 = vst [vmem:[#allocation7 + $0x70] sm:$0xff] 0.0
    %543 = vst [vmem:[#allocation7 + $0x78] sm:$0xff] 0.0
    %544 = vst [vmem:[#allocation7 + $0xb0] sm:$0xff] 0.0
    %545 = vst [vmem:[#allocation7 + $0xb8] sm:$0xff] 0.0
    %546 = vst [vmem:[#allocation7 + $0xf0] sm:$0xff] 0.0
    %547 = vst [vmem:[#allocation7 + $0xf8] sm:$0xff] 0.0
    %548 = vst [vmem:[#allocation7 + $0x10] sm:$0xff] %v345
    %549 = vst [vmem:[#allocation7 + $0x18] sm:$0xff] %v509
    %550 = vst [vmem:[#allocation7 + $0x20] sm:$0xff] %v348
    %551 = vst [vmem:[#allocation7 + $0x28] sm:$0xff] %v512
    %552 = vst [vmem:[#allocation7 + $0x50] sm:$0xff] %v351
    %553 = vst [vmem:[#allocation7 + $0x58] sm:$0xff] %v515
    %554 = vst [vmem:[#allocation7 + $0x60] sm:$0xff] %v354
    %555 = vst [vmem:[#allocation7 + $0x68] sm:$0xff] %v518
    %556 = vst [vmem:[#allocation7 + $0x90] sm:$0xff] %v357
    %557 = vst [vmem:[#allocation7 + $0x98] sm:$0xff] %v521
    %558 = vst [vmem:[#allocation7 + $0xa0] sm:$0xff] %v360
    %559 = vst [vmem:[#allocation7 + $0xa8] sm:$0xff] %v524
    %560 = vst [vmem:[#allocation7 + $0xd0] sm:$0xff] %v363
    %561 = vst [vmem:[#allocation7 + $0xd8] sm:$0xff] %v527
    %562 = vst [vmem:[#allocation7 + $0xe0] sm:$0xff] %v366
    %563 = vst [vmem:[#allocation7 + $0xe8] sm:$0xff] %v530
    // Predicated region
    $region18: #{tpu_custom_call.1} parent=1 // pred_check
      _
    $region19: #{tpu_custom_call.1} parent=1 // pred_check_branch
      %565 = sbr.rel (0) target = $region21
    $region20: #{tpu_custom_call.1} parent=1 // pred_region
      %567 = vsyncadd [#allocation4], 0
      %s568 = sshll.u32 [#allocation7], 4
      %s569 = int_to_ptr.vmem [resolvable:$true] %s568
      %s570 = sshll.u32 %s2, 4
      %s571 = int_to_ptr.hbm [resolvable:$true] %s570
      %576 = dma.vmem_to_hbm [thread:$0]  %s569, 4096, %s571, [#allocation4], 256, 256, 16
    $region21: #{tpu_custom_call.1} parent=1 // pred_fallthru
      _
    // Predicated region
    $region22: #{tpu_custom_call.1} parent=1 // pred_check
      _
    $region23: #{tpu_custom_call.1} parent=1 // pred_check_branch
      %578 = sbr.rel (0) target = $region25
    $region24: #{tpu_custom_call.1} parent=1 // pred_region
      %580 = dma.done [#allocation4], 4096
    $region25: #{tpu_custom_call.1} parent=1 // pred_fallthru
      _
    %581 = vsyncpa [#allocation3], 1
    %582 = vsyncpa [#allocation6], 1
    %583 = vsyncpa [#allocation4], 1

// kernel: tpu_custom_call.1
$region0: #{tpu_custom_call.1}
  #allocation0 [shape = 'u32[]', space=smem, size = 0x4, offset = 0x4, fixed_abs, tag = 'smem constant byte address 0x4 - core index']
  #allocation1 [shape = 'u32[72,128]{1,0:T(1,128)}', space=vmem, size = 0x9000, scoped, tag = 'internal scratch']
  %s0 = inlined_call_operand.hbm [shape: f32[64,512], index: 0, kind: input, shape index: {}]
  %s1 = inlined_call_operand.hbm [shape: f32[512,256], index: 1, kind: input, shape index: {}]
  %s2 = inlined_call_operand.hbm [shape: f32[4,32,256], index: 2, kind: output, shape index: {}]
  %s3 = sld [smem:[#allocation0]]
  $region26: #{tpu_custom_call.1} parent=0
    _
  %s5 = ssub.s32 1, %s3
  %s6 = scalar_select 0, %s5, %s3
  $region1: #{tpu_custom_call.1} parent=0
    #allocation2 [shape = 'u8[131072]{0}', space=vmem, size = 0x20000, scoped, tag = 'input window, operand 0, single buffered']
    #allocation3 [shape = 's32[1]{0}', space=sflag, size = 0x4, scoped, tag = 'scoped memory for tpu_custom_call.1']
    #allocation4 [shape = 's32[1]{0}', space=sflag, size = 0x4, scoped, tag = 'scoped memory for tpu_custom_call.1']
    #allocation5 [shape = 'u8[524288]{0}', space=vmem, size = 0x80000, scoped, tag = 'input window, operand 1, single buffered']
    #allocation6 [shape = 's32[1]{0}', space=sflag, size = 0x4, scoped, tag = 'scoped memory for tpu_custom_call.1']
    #allocation7 [shape = 'u8[131072]{0}', space=vmem, size = 0x20000, scoped, tag = 'output window, operand 0, single buffered']
    %7 = vsyncpa [#allocation3], 0
    %8 = vsyncpa [#allocation6], 0
    %9 = vsyncpa [#allocation4], 0
    // Predicated region
    $region2: #{tpu_custom_call.1} parent=1 // pred_check
      _
    $region3: #{tpu_custom_call.1} parent=1 // pred_check_branch
      %11 = sbr.rel (0) target = $region5
    $region4: #{tpu_custom_call.1} parent=1 // pred_region
      %13 = vsyncadd [#allocation3], 0
      %s14 = sshll.u32 %s0, 4
      %s15 = int_to_ptr.hbm [resolvable:$true] %s14
      %s16 = sshll.u32 [#allocation2], 4
      %s17 = int_to_ptr.vmem [resolvable:$true] %s16
      %22 = dma.hbm_to_vmem [thread:$0]  %s15, 4096, %s17, [#allocation3], 512, 512, 32
    $region5: #{tpu_custom_call.1} parent=1 // pred_fallthru
      _
    // Predicated region
    $region6: #{tpu_custom_call.1} parent=1 // pred_check
      _
    $region7: #{tpu_custom_call.1} parent=1 // pred_check_branch
      %24 = sbr.rel (0) target = $region9
    $region8: #{tpu_custom_call.1} parent=1 // pred_region
      %26 = vsyncadd [#allocation6], 0
      %s27 = sshll.u32 %s1, 4
      %s28 = int_to_ptr.hbm [resolvable:$true] %s27
      %s29 = sshll.u32 [#allocation5], 4
      %s30 = int_to_ptr.vmem [resolvable:$true] %s29
      %35 = dma.hbm_to_vmem [thread:$0]  %s28, 16384, %s30, [#allocation6], 256, 256, 16
    $region9: #{tpu_custom_call.1} parent=1 // pred_fallthru
      _
    // Predicated region
    $region10: #{tpu_custom_call.1} parent=1 // pred_check
      _
    $region11: #{tpu_custom_call.1} parent=1 // pred_check_branch
      %37 = sbr.rel (0) target = $region13
    $region12: #{tpu_custom_call.1} parent=1 // pred_region
      %39 = dma.done [#allocation3], 4096
    $region13: #{tpu_custom_call.1} parent=1 // pred_fallthru
      _
    // Predicated region
    $region14: #{tpu_custom_call.1} parent=1 // pred_check
      _
    $region15: #{tpu_custom_call.1} parent=1 // pred_check_branch
      %41 = sbr.rel (0) target = $region17
    $region16: #{tpu_custom_call.1} parent=1 // pred_region
      %43 = dma.done [#allocation6], 16384
    $region17: #{tpu_custom_call.1} parent=1 // pred_fallthru
      _
    %v44 = vld [vmem:[#allocation2] sm:$0xff]
    %v45 = vld [vmem:[#allocation2 + $0x8] sm:$0xff]
    %v46 = vld [vmem:[#allocation2 + $0x10] sm:$0xff]
    %v47 = vld [vmem:[#allocation2 + $0x18] sm:$0xff]
    %v48 = vld [vmem:[#allocation2 + $0x20] sm:$0xff]
    %v49 = vld [vmem:[#allocation2 + $0x28] sm:$0xff]
    %v50 = vld [vmem:[#allocation2 + $0x30] sm:$0xff]
    %v51 = vld [vmem:[#allocation2 + $0x38] sm:$0xff]
    %v52 = vld [vmem:[#allocation2 + $0x40] sm:$0xff]
    %v53 = vld [vmem:[#allocation2 + $0x48] sm:$0xff]
    %v54 = vld [vmem:[#allocation2 + $0x50] sm:$0xff]
    %v55 = vld [vmem:[#allocation2 + $0x58] sm:$0xff]
    %v56 = vld [vmem:[#allocation2 + $0x60] sm:$0xff]
    %v57 = vld [vmem:[#allocation2 + $0x68] sm:$0xff]
    %v58 = vld [vmem:[#allocation2 + $0x70] sm:$0xff]
    %v59 = vld [vmem:[#allocation2 + $0x78] sm:$0xff]
    %v60 = vld [vmem:[#allocation2 + $0x80] sm:$0xff]
    %v61 = vld [vmem:[#allocation2 + $0x88] sm:$0xff]
    %v62 = vld [vmem:[#allocation2 + $0x90] sm:$0xff]
    %v63 = vld [vmem:[#allocation2 + $0x98] sm:$0xff]
    %v64 = vld [vmem:[#allocation2 + $0xa0] sm:$0xff]
    %v65 = vld [vmem:[#allocation2 + $0xa8] sm:$0xff]
    %v66 = vld [vmem:[#allocation2 + $0xb0] sm:$0xff]
    %v67 = vld [vmem:[#allocation2 + $0xb8] sm:$0xff]
    %v68 = vld [vmem:[#allocation2 + $0xc0] sm:$0xff]
    %v69 = vld [vmem:[#allocation2 + $0xc8] sm:$0xff]
    %v70 = vld [vmem:[#allocation2 + $0xd0] sm:$0xff]
    %v71 = vld [vmem:[#allocation2 + $0xd8] sm:$0xff]
    %v72 = vld [vmem:[#allocation2 + $0xe0] sm:$0xff]
    %v73 = vld [vmem:[#allocation2 + $0xe8] sm:$0xff]
    %v74 = vld [vmem:[#allocation2 + $0xf0] sm:$0xff]
    %v75 = vld [vmem:[#allocation2 + $0xf8] sm:$0xff]
    %v76 = vld [vmem:[#allocation5] sm:$0xff]
    %v77 = vld [vmem:[#allocation5 + $0x8] sm:$0xff]
    %v78 = vld [vmem:[#allocation5 + $0x10] sm:$0xff]
    %v79 = vld [vmem:[#allocation5 + $0x18] sm:$0xff]
    %v80 = vld [vmem:[#allocation5 + $0x20] sm:$0xff]
    %v81 = vld [vmem:[#allocation5 + $0x28] sm:$0xff]
    %v82 = vld [vmem:[#allocation5 + $0x30] sm:$0xff]
    %v83 = vld [vmem:[#allocation5 + $0x38] sm:$0xff]
    %v84 = vld [vmem:[#allocation5 + $0x40] sm:$0xff]
    %v85 = vld [vmem:[#allocation5 + $0x48] sm:$0xff]
    %v86 = vld [vmem:[#allocation5 + $0x50] sm:$0xff]
    %v87 = vld [vmem:[#allocation5 + $0x58] sm:$0xff]
    %v88 = vld [vmem:[#allocation5 + $0x60] sm:$0xff]
    %v89 = vld [vmem:[#allocation5 + $0x68] sm:$0xff]
    %v90 = vld [vmem:[#allocation5 + $0x70] sm:$0xff]
    %v91 = vld [vmem:[#allocation5 + $0x78] sm:$0xff]
    %v92 = vld [vmem:[#allocation5 + $0x80] sm:$0xff]
    %v93 = vld [vmem:[#allocation5 + $0x88] sm:$0xff]
    %v94 = vld [vmem:[#allocation5 + $0x90] sm:$0xff]
    %v95 = vld [vmem:[#allocation5 + $0x98] sm:$0xff]
    %v96 = vld [vmem:[#allocation5 + $0xa0] sm:$0xff]
    %v97 = vld [vmem:[#allocation5 + $0xa8] sm:$0xff]
    %v98 = vld [vmem:[#allocation5 + $0xb0] sm:$0xff]
    %v99 = vld [vmem:[#allocation5 + $0xb8] sm:$0xff]
    %v100 = vld [vmem:[#allocation5 + $0xc0] sm:$0xff]
    %v101 = vld [vmem:[#allocation5 + $0xc8] sm:$0xff]
    %v102 = vld [vmem:[#allocation5 + $0xd0] sm:$0xff]
    %v103 = vld [vmem:[#allocation5 + $0xd8] sm:$0xff]
    %v104 = vld [vmem:[#allocation5 + $0xe0] sm:$0xff]
    %v105 = vld [vmem:[#allocation5 + $0xe8] sm:$0xff]
    %v106 = vld [vmem:[#allocation5 + $0xf0] sm:$0xff]
    %v107 = vld [vmem:[#allocation5 + $0xf8] sm:$0xff]
    %v108 = vld [vmem:[#allocation5 + $0x100] sm:$0xff]
    %v109 = vld [vmem:[#allocation5 + $0x108] sm:$0xff]
    %v110 = vld [vmem:[#allocation5 + $0x110] sm:$0xff]
    %v111 = vld [vmem:[#allocation5 + $0x118] sm:$0xff]
    %v112 = vld [vmem:[#allocation5 + $0x120] sm:$0xff]
    %v113 = vld [vmem:[#allocation5 + $0x128] sm:$0xff]
    %v114 = vld [vmem:[#allocation5 + $0x130] sm:$0xff]
    %v115 = vld [vmem:[#allocation5 + $0x138] sm:$0xff]
    %v116 = vld [vmem:[#allocation5 + $0x140] sm:$0xff]
    %v117 = vld [vmem:[#allocation5 + $0x148] sm:$0xff]
    %v118 = vld [vmem:[#allocation5 + $0x150] sm:$0xff]
    %v119 = vld [vmem:[#allocation5 + $0x158] sm:$0xff]
    %v120 = vld [vmem:[#allocation5 + $0x160] sm:$0xff]
    %v121 = vld [vmem:[#allocation5 + $0x168] sm:$0xff]
    %v122 = vld [vmem:[#allocation5 + $0x170] sm:$0xff]
    %v123 = vld [vmem:[#allocation5 + $0x178] sm:$0xff]
    %v124 = vld [vmem:[#allocation5 + $0x180] sm:$0xff]
    %v125 = vld [vmem:[#allocation5 + $0x188] sm:$0xff]
    %v126 = vld [vmem:[#allocation5 + $0x190] sm:$0xff]
    %v127 = vld [vmem:[#allocation5 + $0x198] sm:$0xff]
    %v128 = vld [vmem:[#allocation5 + $0x1a0] sm:$0xff]
    %v129 = vld [vmem:[#allocation5 + $0x1a8] sm:$0xff]
    %v130 = vld [vmem:[#allocation5 + $0x1b0] sm:$0xff]
    %v131 = vld [vmem:[#allocation5 + $0x1b8] sm:$0xff]
    %v132 = vld [vmem:[#allocation5 + $0x1c0] sm:$0xff]
    %v133 = vld [vmem:[#allocation5 + $0x1c8] sm:$0xff]
    %v134 = vld [vmem:[#allocation5 + $0x1d0] sm:$0xff]
    %v135 = vld [vmem:[#allocation5 + $0x1d8] sm:$0xff]
    %v136 = vld [vmem:[#allocation5 + $0x1e0] sm:$0xff]
    %v137 = vld [vmem:[#allocation5 + $0x1e8] sm:$0xff]
    %v138 = vld [vmem:[#allocation5 + $0x1f0] sm:$0xff]
    %v139 = vld [vmem:[#allocation5 + $0x1f8] sm:$0xff]
    %v140 = vld [vmem:[#allocation5 + $0x200] sm:$0xff]
    %v141 = vld [vmem:[#allocation5 + $0x208] sm:$0xff]
    %v142 = vld [vmem:[#allocation5 + $0x210] sm:$0xff]
    %v143 = vld [vmem:[#allocation5 + $0x218] sm:$0xff]
    %v144 = vld [vmem:[#allocation5 + $0x220] sm:$0xff]
    %v145 = vld [vmem:[#allocation5 + $0x228] sm:$0xff]
    %v146 = vld [vmem:[#allocation5 + $0x230] sm:$0xff]
    %v147 = vld [vmem:[#allocation5 + $0x238] sm:$0xff]
    %v148 = vld [vmem:[#allocation5 + $0x240] sm:$0xff]
    %v149 = vld [vmem:[#allocation5 + $0x248] sm:$0xff]
    %v150 = vld [vmem:[#allocation5 + $0x250] sm:$0xff]
    %v151 = vld [vmem:[#allocation5 + $0x258] sm:$0xff]
    %v152 = vld [vmem:[#allocation5 + $0x260] sm:$0xff]
    %v153 = vld [vmem:[#allocation5 + $0x268] sm:$0xff]
    %v154 = vld [vmem:[#allocation5 + $0x270] sm:$0xff]
    %v155 = vld [vmem:[#allocation5 + $0x278] sm:$0xff]
    %v156 = vld [vmem:[#allocation5 + $0x280] sm:$0xff]
    %v157 = vld [vmem:[#allocation5 + $0x288] sm:$0xff]
    %v158 = vld [vmem:[#allocation5 + $0x290] sm:$0xff]
    %v159 = vld [vmem:[#allocation5 + $0x298] sm:$0xff]
    %v160 = vld [vmem:[#allocation5 + $0x2a0] sm:$0xff]
    %v161 = vld [vmem:[#allocation5 + $0x2a8] sm:$0xff]
    %v162 = vld [vmem:[#allocation5 + $0x2b0] sm:$0xff]
    %v163 = vld [vmem:[#allocation5 + $0x2b8] sm:$0xff]
    %v164 = vld [vmem:[#allocation5 + $0x2c0] sm:$0xff]
    %v165 = vld [vmem:[#allocation5 + $0x2c8] sm:$0xff]
    %v166 = vld [vmem:[#allocation5 + $0x2d0] sm:$0xff]
    %v167 = vld [vmem:[#allocation5 + $0x2d8] sm:$0xff]
    %v168 = vld [vmem:[#allocation5 + $0x2e0] sm:$0xff]
    %v169 = vld [vmem:[#allocation5 + $0x2e8] sm:$0xff]
    %v170 = vld [vmem:[#allocation5 + $0x2f0] sm:$0xff]
    %v171 = vld [vmem:[#allocation5 + $0x2f8] sm:$0xff]
    %v172 = vld [vmem:[#allocation5 + $0x300] sm:$0xff]
    %v173 = vld [vmem:[#allocation5 + $0x308] sm:$0xff]
    %v174 = vld [vmem:[#allocation5 + $0x310] sm:$0xff]
    %v175 = vld [vmem:[#allocation5 + $0x318] sm:$0xff]
    %v176 = vld [vmem:[#allocation5 + $0x320] sm:$0xff]
    %v177 = vld [vmem:[#allocation5 + $0x328] sm:$0xff]
    %v178 = vld [vmem:[#allocation5 + $0x330] sm:$0xff]
    %v179 = vld [vmem:[#allocation5 + $0x338] sm:$0xff]
    %v180 = vld [vmem:[#allocation5 + $0x340] sm:$0xff]
    %v181 = vld [vmem:[#allocation5 + $0x348] sm:$0xff]
    %v182 = vld [vmem:[#allocation5 + $0x350] sm:$0xff]
    %v183 = vld [vmem:[#allocation5 + $0x358] sm:$0xff]
    %v184 = vld [vmem:[#allocation5 + $0x360] sm:$0xff]
    %v185 = vld [vmem:[#allocation5 + $0x368] sm:$0xff]
    %v186 = vld [vmem:[#allocation5 + $0x370] sm:$0xff]
    %v187 = vld [vmem:[#allocation5 + $0x378] sm:$0xff]
    %v188 = vld [vmem:[#allocation5 + $0x380] sm:$0xff]
    %v189 = vld [vmem:[#allocation5 + $0x388] sm:$0xff]
    %v190 = vld [vmem:[#allocation5 + $0x390] sm:$0xff]
    %v191 = vld [vmem:[#allocation5 + $0x398] sm:$0xff]
    %v192 = vld [vmem:[#allocation5 + $0x3a0] sm:$0xff]
    %v193 = vld [vmem:[#allocation5 + $0x3a8] sm:$0xff]
    %v194 = vld [vmem:[#allocation5 + $0x3b0] sm:$0xff]
    %v195 = vld [vmem:[#allocation5 + $0x3b8] sm:$0xff]
    %v196 = vld [vmem:[#allocation5 + $0x3c0] sm:$0xff]
    %v197 = vld [vmem:[#allocation5 + $0x3c8] sm:$0xff]
    %v198 = vld [vmem:[#allocation5 + $0x3d0] sm:$0xff]
    %v199 = vld [vmem:[#allocation5 + $0x3d8] sm:$0xff]
    %v200 = vld [vmem:[#allocation5 + $0x3e0] sm:$0xff]
    %v201 = vld [vmem:[#allocation5 + $0x3e8] sm:$0xff]
    %v202 = vld [vmem:[#allocation5 + $0x3f0] sm:$0xff]
    %v203 = vld [vmem:[#allocation5 + $0x3f8] sm:$0xff]
    %204 = vmatpush.msra.mxu0 %v106
    %205 = vmatpush.msra.mxu0 %v104
    %206 = vmatpush.msra.mxu0 %v102
    %207 = vmatpush.msra.mxu0 %v100
    %208 = vmatpush.msra.mxu0 %v98
    %209 = vmatpush.msra.mxu0 %v96
    %210 = vmatpush.msra.mxu0 %v94
    %211 = vmatpush.msra.mxu0 %v92
    %212 = vmatpush.msra.mxu0 %v90
    %213 = vmatpush.msra.mxu0 %v88
    %214 = vmatpush.msra.mxu0 %v86
    %215 = vmatpush.msra.mxu0 %v84
    %216 = vmatpush.msra.mxu0 %v82
    %217 = vmatpush.msra.mxu0 %v80
    %218 = vmatpush.msra.mxu0 %v78
    %219 = vmatpush.msra.mxu0 %v76
    %220 = vmatmul.f32.gmra.mxu0 %v44
    %v221 = vpop.f32.mrf.mxu0
    %v222 = vadd.f32 0.0, %v221
    %223 = vmatmul.f32.gmra.mxu0 %v48
    %v224 = vpop.f32.mrf.mxu0
    %v225 = vadd.f32 0.0, %v224
    %226 = vmatmul.f32.gmra.mxu0 %v52
    %v227 = vpop.f32.mrf.mxu0
    %v228 = vadd.f32 0.0, %v227
    %229 = vmatmul.f32.gmra.mxu0 %v56
    %v230 = vpop.f32.mrf.mxu0
    %v231 = vadd.f32 0.0, %v230
    %232 = vmatmul.f32.gmra.mxu0 %v60
    %v233 = vpop.f32.mrf.mxu0
    %v234 = vadd.f32 0.0, %v233
    %235 = vmatmul.f32.gmra.mxu0 %v64
    %v236 = vpop.f32.mrf.mxu0
    %v237 = vadd.f32 0.0, %v236
    %238 = vmatmul.f32.gmra.mxu0 %v68
    %v239 = vpop.f32.mrf.mxu0
    %v240 = vadd.f32 0.0, %v239
    %241 = vmatmul.f32.gmra.mxu0 %v72
    %v242 = vpop.f32.mrf.mxu0
    %v243 = vadd.f32 0.0, %v242
    %244 = vdwg.mxu0
    %245 = vmatpush.msra.mxu0 %v138
    %246 = vmatpush.msra.mxu0 %v136
    %247 = vmatpush.msra.mxu0 %v134
    %248 = vmatpush.msra.mxu0 %v132
    %249 = vmatpush.msra.mxu0 %v130
    %250 = vmatpush.msra.mxu0 %v128
    %251 = vmatpush.msra.mxu0 %v126
    %252 = vmatpush.msra.mxu0 %v124
    %253 = vmatpush.msra.mxu0 %v122
    %254 = vmatpush.msra.mxu0 %v120
    %255 = vmatpush.msra.mxu0 %v118
    %256 = vmatpush.msra.mxu0 %v116
    %257 = vmatpush.msra.mxu0 %v114
    %258 = vmatpush.msra.mxu0 %v112
    %259 = vmatpush.msra.mxu0 %v110
    %260 = vmatpush.msra.mxu0 %v108
    %261 = vmatmul.f32.gmra.mxu0 %v45
    %v262 = vpop.f32.mrf.mxu0
    %v263 = vadd.f32 %v222, %v262
    %264 = vmatmul.f32.gmra.mxu0 %v49
    %v265 = vpop.f32.mrf.mxu0
    %v266 = vadd.f32 %v225, %v265
    %267 = vmatmul.f32.gmra.mxu0 %v53
    %v268 = vpop.f32.mrf.mxu0
    %v269 = vadd.f32 %v228, %v268
    %270 = vmatmul.f32.gmra.mxu0 %v57
    %v271 = vpop.f32.mrf.mxu0
    %v272 = vadd.f32 %v231, %v271
    %273 = vmatmul.f32.gmra.mxu0 %v61
    %v274 = vpop.f32.mrf.mxu0
    %v275 = vadd.f32 %v234, %v274
    %276 = vmatmul.f32.gmra.mxu0 %v65
    %v277 = vpop.f32.mrf.mxu0
    %v278 = vadd.f32 %v237, %v277
    %279 = vmatmul.f32.gmra.mxu0 %v69
    %v280 = vpop.f32.mrf.mxu0
    %v281 = vadd.f32 %v240, %v280
    %282 = vmatmul.f32.gmra.mxu0 %v73
    %v283 = vpop.f32.mrf.mxu0
    %v284 = vadd.f32 %v243, %v283
    %285 = vdwg.mxu0
    %286 = vmatpush.msra.mxu0 %v170
    %287 = vmatpush.msra.mxu0 %v168
    %288 = vmatpush.msra.mxu0 %v166
    %289 = vmatpush.msra.mxu0 %v164
    %290 = vmatpush.msra.mxu0 %v162
    %291 = vmatpush.msra.mxu0 %v160
    %292 = vmatpush.msra.mxu0 %v158
    %293 = vmatpush.msra.mxu0 %v156
    %294 = vmatpush.msra.mxu0 %v154
    %295 = vmatpush.msra.mxu0 %v152
    %296 = vmatpush.msra.mxu0 %v150
    %297 = vmatpush.msra.mxu0 %v148
    %298 = vmatpush.msra.mxu0 %v146
    %299 = vmatpush.msra.mxu0 %v144
    %300 = vmatpush.msra.mxu0 %v142
    %301 = vmatpush.msra.mxu0 %v140
    %302 = vmatmul.f32.gmra.mxu0 %v46
    %v303 = vpop.f32.mrf.mxu0
    %v304 = vadd.f32 %v263, %v303
    %305 = vmatmul.f32.gmra.mxu0 %v50
    %v306 = vpop.f32.mrf.mxu0
    %v307 = vadd.f32 %v266, %v306
    %308 = vmatmul.f32.gmra.mxu0 %v54
    %v309 = vpop.f32.mrf.mxu0
    %v310 = vadd.f32 %v269, %v309
    %311 = vmatmul.f32.gmra.mxu0 %v58
    %v312 = vpop.f32.mrf.mxu0
    %v313 = vadd.f32 %v272, %v312
    %314 = vmatmul.f32.gmra.mxu0 %v62
    %v315 = vpop.f32.mrf.mxu0
    %v316 = vadd.f32 %v275, %v315
    %317 = vmatmul.f32.gmra.mxu0 %v66
    %v318 = vpop.f32.mrf.mxu0
    %v319 = vadd.f32 %v278, %v318
    %320 = vmatmul.f32.gmra.mxu0 %v70
    %v321 = vpop.f32.mrf.mxu0
    %v322 = vadd.f32 %v281, %v321
    %323 = vmatmul.f32.gmra.mxu0 %v74
    %v324 = vpop.f32.mrf.mxu0
    %v325 = vadd.f32 %v284, %v324
    %326 = vdwg.mxu0
    %327 = vmatpush.msra.mxu0 %v202
    %328 = vmatpush.msra.mxu0 %v200
    %329 = vmatpush.msra.mxu0 %v198
    %330 = vmatpush.msra.mxu0 %v196
    %331 = vmatpush.msra.mxu0 %v194
    %332 = vmatpush.msra.mxu0 %v192
    %333 = vmatpush.msra.mxu0 %v190
    %334 = vmatpush.msra.mxu0 %v188
    %335 = vmatpush.msra.mxu0 %v186
    %336 = vmatpush.msra.mxu0 %v184
    %337 = vmatpush.msra.mxu0 %v182
    %338 = vmatpush.msra.mxu0 %v180
    %339 = vmatpush.msra.mxu0 %v178
    %340 = vmatpush.msra.mxu0 %v176
    %341 = vmatpush.msra.mxu0 %v174
    %342 = vmatpush.msra.mxu0 %v172
    %343 = vmatmul.f32.gmra.mxu0 %v47
    %v344 = vpop.f32.mrf.mxu0
    %v345 = vadd.f32 %v304, %v344
    %346 = vmatmul.f32.gmra.mxu0 %v51
    %v347 = vpop.f32.mrf.mxu0
    %v348 = vadd.f32 %v307, %v347
    %349 = vmatmul.f32.gmra.mxu0 %v55
    %v350 = vpop.f32.mrf.mxu0
    %v351 = vadd.f32 %v310, %v350
    %352 = vmatmul.f32.gmra.mxu0 %v59
    %v353 = vpop.f32.mrf.mxu0
    %v354 = vadd.f32 %v313, %v353
    %355 = vmatmul.f32.gmra.mxu0 %v63
    %v356 = vpop.f32.mrf.mxu0
    %v357 = vadd.f32 %v316, %v356
    %358 = vmatmul.f32.gmra.mxu0 %v67
    %v359 = vpop.f32.mrf.mxu0
    %v360 = vadd.f32 %v319, %v359
    %361 = vmatmul.f32.gmra.mxu0 %v71
    %v362 = vpop.f32.mrf.mxu0
    %v363 = vadd.f32 %v322, %v362
    %364 = vmatmul.f32.gmra.mxu0 %v75
    %v365 = vpop.f32.mrf.mxu0
    %v366 = vadd.f32 %v325, %v365
    %367 = vdwg.mxu0
    %368 = vmatpush.msra.mxu0 %v107
    %369 = vmatpush.msra.mxu0 %v105
    %370 = vmatpush.msra.mxu0 %v103
    %371 = vmatpush.msra.mxu0 %v101
    %372 = vmatpush.msra.mxu0 %v99
    %373 = vmatpush.msra.mxu0 %v97
    %374 = vmatpush.msra.mxu0 %v95
    %375 = vmatpush.msra.mxu0 %v93
    %376 = vmatpush.msra.mxu0 %v91
    %377 = vmatpush.msra.mxu0 %v89
    %378 = vmatpush.msra.mxu0 %v87
    %379 = vmatpush.msra.mxu0 %v85
    %380 = vmatpush.msra.mxu0 %v83
    %381 = vmatpush.msra.mxu0 %v81
    %382 = vmatpush.msra.mxu0 %v79
    %383 = vmatpush.msra.mxu0 %v77
    %384 = vmatmul.f32.gmra.mxu0 %v44
    %v385 = vpop.f32.mrf.mxu0
    %v386 = vadd.f32 0.0, %v385
    %387 = vmatmul.f32.gmra.mxu0 %v48
    %v388 = vpop.f32.mrf.mxu0
    %v389 = vadd.f32 0.0, %v388
    %390 = vmatmul.f32.gmra.mxu0 %v52
    %v391 = vpop.f32.mrf.mxu0
    %v392 = vadd.f32 0.0, %v391
    %393 = vmatmul.f32.gmra.mxu0 %v56
    %v394 = vpop.f32.mrf.mxu0
    %v395 = vadd.f32 0.0, %v394
    %396 = vmatmul.f32.gmra.mxu0 %v60
    %v397 = vpop.f32.mrf.mxu0
    %v398 = vadd.f32 0.0, %v397
    %399 = vmatmul.f32.gmra.mxu0 %v64
    %v400 = vpop.f32.mrf.mxu0
    %v401 = vadd.f32 0.0, %v400
    %402 = vmatmul.f32.gmra.mxu0 %v68
    %v403 = vpop.f32.mrf.mxu0
    %v404 = vadd.f32 0.0, %v403
    %405 = vmatmul.f32.gmra.mxu0 %v72
    %v406 = vpop.f32.mrf.mxu0
    %v407 = vadd.f32 0.0, %v406
    %408 = vdwg.mxu0
    %409 = vmatpush.msra.mxu0 %v139
    %410 = vmatpush.msra.mxu0 %v137
    %411 = vmatpush.msra.mxu0 %v135
    %412 = vmatpush.msra.mxu0 %v133
    %413 = vmatpush.msra.mxu0 %v131
    %414 = vmatpush.msra.mxu0 %v129
    %415 = vmatpush.msra.mxu0 %v127
    %416 = vmatpush.msra.mxu0 %v125
    %417 = vmatpush.msra.mxu0 %v123
    %418 = vmatpush.msra.mxu0 %v121
    %419 = vmatpush.msra.mxu0 %v119
    %420 = vmatpush.msra.mxu0 %v117
    %421 = vmatpush.msra.mxu0 %v115
    %422 = vmatpush.msra.mxu0 %v113
    %423 = vmatpush.msra.mxu0 %v111
    %424 = vmatpush.msra.mxu0 %v109
    %425 = vmatmul.f32.gmra.mxu0 %v45
    %v426 = vpop.f32.mrf.mxu0
    %v427 = vadd.f32 %v386, %v426
    %428 = vmatmul.f32.gmra.mxu0 %v49
    %v429 = vpop.f32.mrf.mxu0
    %v430 = vadd.f32 %v389, %v429
    %431 = vmatmul.f32.gmra.mxu0 %v53
    %v432 = vpop.f32.mrf.mxu0
    %v433 = vadd.f32 %v392, %v432
    %434 = vmatmul.f32.gmra.mxu0 %v57
    %v435 = vpop.f32.mrf.mxu0
    %v436 = vadd.f32 %v395, %v435
    %437 = vmatmul.f32.gmra.mxu0 %v61
    %v438 = vpop.f32.mrf.mxu0
    %v439 = vadd.f32 %v398, %v438
    %440 = vmatmul.f32.gmra.mxu0 %v65
    %v441 = vpop.f32.mrf.mxu0
    %v442 = vadd.f32 %v401, %v441
    %443 = vmatmul.f32.gmra.mxu0 %v69
    %v444 = vpop.f32.mrf.mxu0
    %v445 = vadd.f32 %v404, %v444
    %446 = vmatmul.f32.gmra.mxu0 %v73
    %v447 = vpop.f32.mrf.mxu0
    %v448 = vadd.f32 %v407, %v447
    %449 = vdwg.mxu0
    %450 = vmatpush.msra.mxu0 %v171
    %451 = vmatpush.msra.mxu0 %v169
    %452 = vmatpush.msra.mxu0 %v167
    %453 = vmatpush.msra.mxu0 %v165
    %454 = vmatpush.msra.mxu0 %v163
    %455 = vmatpush.msra.mxu0 %v161
    %456 = vmatpush.msra.mxu0 %v159
    %457 = vmatpush.msra.mxu0 %v157
    %458 = vmatpush.msra.mxu0 %v155
    %459 = vmatpush.msra.mxu0 %v153
    %460 = vmatpush.msra.mxu0 %v151
    %461 = vmatpush.msra.mxu0 %v149
    %462 = vmatpush.msra.mxu0 %v147
    %463 = vmatpush.msra.mxu0 %v145
    %464 = vmatpush.msra.mxu0 %v143
    %465 = vmatpush.msra.mxu0 %v141
    %466 = vmatmul.f32.gmra.mxu0 %v46
    %v467 = vpop.f32.mrf.mxu0
    %v468 = vadd.f32 %v427, %v467
    %469 = vmatmul.f32.gmra.mxu0 %v50
    %v470 = vpop.f32.mrf.mxu0
    %v471 = vadd.f32 %v430, %v470
    %472 = vmatmul.f32.gmra.mxu0 %v54
    %v473 = vpop.f32.mrf.mxu0
    %v474 = vadd.f32 %v433, %v473
    %475 = vmatmul.f32.gmra.mxu0 %v58
    %v476 = vpop.f32.mrf.mxu0
    %v477 = vadd.f32 %v436, %v476
    %478 = vmatmul.f32.gmra.mxu0 %v62
    %v479 = vpop.f32.mrf.mxu0
    %v480 = vadd.f32 %v439, %v479
    %481 = vmatmul.f32.gmra.mxu0 %v66
    %v482 = vpop.f32.mrf.mxu0
    %v483 = vadd.f32 %v442, %v482
    %484 = vmatmul.f32.gmra.mxu0 %v70
    %v485 = vpop.f32.mrf.mxu0
    %v486 = vadd.f32 %v445, %v485
    %487 = vmatmul.f32.gmra.mxu0 %v74
    %v488 = vpop.f32.mrf.mxu0
    %v489 = vadd.f32 %v448, %v488
    %490 = vdwg.mxu0
    %491 = vmatpush.msra.mxu0 %v203
    %492 = vmatpush.msra.mxu0 %v201
    %493 = vmatpush.msra.mxu0 %v199
    %494 = vmatpush.msra.mxu0 %v197
    %495 = vmatpush.msra.mxu0 %v195
    %496 = vmatpush.msra.mxu0 %v193
    %497 = vmatpush.msra.mxu0 %v191
    %498 = vmatpush.msra.mxu0 %v189
    %499 = vmatpush.msra.mxu0 %v187
    %500 = vmatpush.msra.mxu0 %v185
    %501 = vmatpush.msra.mxu0 %v183
    %502 = vmatpush.msra.mxu0 %v181
    %503 = vmatpush.msra.mxu0 %v179
    %504 = vmatpush.msra.mxu0 %v177
    %505 = vmatpush.msra.mxu0 %v175
    %506 = vmatpush.msra.mxu0 %v173
    %507 = vmatmul.f32.gmra.mxu0 %v47
    %v508 = vpop.f32.mrf.mxu0
    %v509 = vadd.f32 %v468, %v508
    %510 = vmatmul.f32.gmra.mxu0 %v51
    %v511 = vpop.f32.mrf.mxu0
    %v512 = vadd.f32 %v471, %v511
    %513 = vmatmul.f32.gmra.mxu0 %v55
    %v514 = vpop.f32.mrf.mxu0
    %v515 = vadd.f32 %v474, %v514
    %516 = vmatmul.f32.gmra.mxu0 %v59
    %v517 = vpop.f32.mrf.mxu0
    %v518 = vadd.f32 %v477, %v517
    %519 = vmatmul.f32.gmra.mxu0 %v63
    %v520 = vpop.f32.mrf.mxu0
    %v521 = vadd.f32 %v480, %v520
    %522 = vmatmul.f32.gmra.mxu0 %v67
    %v523 = vpop.f32.mrf.mxu0
    %v524 = vadd.f32 %v483, %v523
    %525 = vmatmul.f32.gmra.mxu0 %v71
    %v526 = vpop.f32.mrf.mxu0
    %v527 = vadd.f32 %v486, %v526
    %528 = vmatmul.f32.gmra.mxu0 %v75
    %v529 = vpop.f32.mrf.mxu0
    %v530 = vadd.f32 %v489, %v529
    %531 = vdwg.mxu0
    %532 = vst [vmem:[#allocation7] sm:$0xff] 0.0
    %533 = vst [vmem:[#allocation7 + $0x8] sm:$0xff] 0.0
    %534 = vst [vmem:[#allocation7 + $0x40] sm:$0xff] 0.0
    %535 = vst [vmem:[#allocation7 + $0x48] sm:$0xff] 0.0
    %536 = vst [vmem:[#allocation7 + $0x80] sm:$0xff] 0.0
    %537 = vst [vmem:[#allocation7 + $0x88] sm:$0xff] 0.0
    %538 = vst [vmem:[#allocation7 + $0xc0] sm:$0xff] 0.0
    %539 = vst [vmem:[#allocation7 + $0xc8] sm:$0xff] 0.0
    %540 = vst [vmem:[#allocation7 + $0x30] sm:$0xff] 0.0
    %541 = vst [vmem:[#allocation7 + $0x38] sm:$0xff] 0.0
    %542 = vst [vmem:[#allocation7 + $0x70] sm:$0xff] 0.0
    %543 = vst [vmem:[#allocation7 + $0x78] sm:$0xff] 0.0
    %544 = vst [vmem:[#allocation7 + $0xb0] sm:$0xff] 0.0
    %545 = vst [vmem:[#allocation7 + $0xb8] sm:$0xff] 0.0
    %546 = vst [vmem:[#allocation7 + $0xf0] sm:$0xff] 0.0
    %547 = vst [vmem:[#allocation7 + $0xf8] sm:$0xff] 0.0
    %548 = vst [vmem:[#allocation7 + $0x10] sm:$0xff] %v345
    %549 = vst [vmem:[#allocation7 + $0x18] sm:$0xff] %v509
    %550 = vst [vmem:[#allocation7 + $0x20] sm:$0xff] %v348
    %551 = vst [vmem:[#allocation7 + $0x28] sm:$0xff] %v512
    %552 = vst [vmem:[#allocation7 + $0x50] sm:$0xff] %v351
    %553 = vst [vmem:[#allocation7 + $0x58] sm:$0xff] %v515
    %554 = vst [vmem:[#allocation7 + $0x60] sm:$0xff] %v354
    %555 = vst [vmem:[#allocation7 + $0x68] sm:$0xff] %v518
    %556 = vst [vmem:[#allocation7 + $0x90] sm:$0xff] %v357
    %557 = vst [vmem:[#allocation7 + $0x98] sm:$0xff] %v521
    %558 = vst [vmem:[#allocation7 + $0xa0] sm:$0xff] %v360
    %559 = vst [vmem:[#allocation7 + $0xa8] sm:$0xff] %v524
    %560 = vst [vmem:[#allocation7 + $0xd0] sm:$0xff] %v363
    %561 = vst [vmem:[#allocation7 + $0xd8] sm:$0xff] %v527
    %562 = vst [vmem:[#allocation7 + $0xe0] sm:$0xff] %v366
    %563 = vst [vmem:[#allocation7 + $0xe8] sm:$0xff] %v530
    // Predicated region
    $region18: #{tpu_custom_call.1} parent=1 // pred_check
      _
    $region19: #{tpu_custom_call.1} parent=1 // pred_check_branch
      %565 = sbr.rel (0) target = $region21
    $region20: #{tpu_custom_call.1} parent=1 // pred_region
      %567 = vsyncadd [#allocation4], 0
      %s568 = sshll.u32 [#allocation7], 4
      %s569 = int_to_ptr.vmem [resolvable:$true] %s568
      %s570 = sshll.u32 %s2, 4
      %s571 = int_to_ptr.hbm [resolvable:$true] %s570
      %576 = dma.vmem_to_hbm [thread:$0]  %s569, 4096, %s571, [#allocation4], 256, 256, 16
    $region21: #{tpu_custom_call.1} parent=1 // pred_fallthru
      _
    // Predicated region
    $region22: #{tpu_custom_call.1} parent=1 // pred_check
      _
    $region23: #{tpu_custom_call.1} parent=1 // pred_check_branch
      %578 = sbr.rel (0) target = $region25
    $region24: #{tpu_custom_call.1} parent=1 // pred_region
      %580 = dma.done [#allocation4], 4096
    $region25: #{tpu_custom_call.1} parent=1 // pred_fallthru
      _
    %581 = vsyncpa [#allocation3], 1
    %582 = vsyncpa [#allocation6], 1
    %583 = vsyncpa [#allocation4], 1

</llo_original>
